<compile_context>
chip_gen: v7x
topology: tpu7x:2x2x1
jax: 0.10.0
libtpu: 0.0.40
codegen_flags: <defaults>
</compile_context>

<pallas_src>
import jax
import jax.numpy as jnp
from jax import lax
from jax.experimental import pallas as pl
from jax.experimental.pallas import tpu as pltpu

_LN_EPS = 1e-5


def _potential_kernel(x_ref,
                      w1_ref, b1_ref,
                      w2_ref, b2_ref,
                      w3_ref, b3_ref,
                      o_ref):
    """Fused fc1 -> tanh -> LN -> fc2 -> tanh -> LN -> fc3 on one row tile."""
    eps = jnp.float32(_LN_EPS)
    mm_dtype = w1_ref.dtype          # MXU operand dtype (bf16 fast path or f32)

    def norm(h):                     # LayerNorm; affine folded into next linear
        mu = jnp.mean(h, axis=-1, keepdims=True)
        var = jnp.mean(jnp.square(h - mu), axis=-1, keepdims=True)
        return (h - mu) * lax.rsqrt(var + eps)

    x = x_ref[...].astype(mm_dtype)

    h = jnp.tanh(
        jnp.dot(x, w1_ref[...], preferred_element_type=jnp.float32) + b1_ref[...])
    h = norm(h)

    h = jnp.tanh(
        jnp.dot(h.astype(mm_dtype), w2_ref[...],
                preferred_element_type=jnp.float32) + b2_ref[...])
    h = norm(h)

    out = jnp.dot(h.astype(mm_dtype), w3_ref[...],
                  preferred_element_type=jnp.float32) + b3_ref[...]
    o_ref[...] = out.astype(o_ref.dtype)


def potential_forward(x, params, *, block_rows=2048, matmul_dtype=jnp.bfloat16):
    """Fused Potential MLP forward. x: (B, 2*in_dim)."""
    w1, b1, g1, be1, w2, b2, g2, be2, w3, b3 = params
    b, two_d = x.shape
    out_dim = w3.shape[1]

    # --- host-side param prep -------------------------------------------------
    # Fold LayerNorm affines into the following linear layer (f32 precompute).
    w2f = g1[:, None] * w2
    b2f = be1 @ w2 + b2
    w3f = g2[:, None] * w3
    b3f = be2 @ w3 + b3

    # MXU operand dtype for the weights; biases stay f32 (added post-accumulate).
    w1c = w1.astype(matmul_dtype)
    w2c = w2f.astype(matmul_dtype)
    w3c = w3f.astype(matmul_dtype)
    b1r = b1.reshape(1, -1).astype(jnp.float32)
    b2r = b2f.reshape(1, -1).astype(jnp.float32)
    b3r = b3f.reshape(1, -1).astype(jnp.float32)

    # --- tiling ---------------------------------------------------------------
    # Sublane multiple from input dtype: f32 -> 8, bf16 -> 16, int8/fp8 -> 32.
    mult = max(8, 32 // jnp.dtype(x.dtype).itemsize)

    def round_up(v, m):
        return ((v + m - 1) // m) * m

    tb = min(block_rows, round_up(b, mult))
    if b > 2 * mult:
        # Keep at least 2 grid steps so v7x's two TensorCores both get work.
        tb = min(tb, round_up(pl.cdiv(b, 2), mult))
    grid = (pl.cdiv(b, tb),)   # ragged last block handled by Pallas (no pad copy)

    def param_spec(arr):
        # Tiny parameter array: same full block every grid step.
        return pl.BlockSpec(arr.shape, lambda i: (0, 0))

    return pl.pallas_call(
        _potential_kernel,
        out_shape=jax.ShapeDtypeStruct((b, out_dim), x.dtype),
        grid=grid,
        in_specs=[
            pl.BlockSpec((tb, two_d), lambda i: (i, 0)),
            param_spec(w1c), param_spec(b1r),
            param_spec(w2c), param_spec(b2r),
            param_spec(w3c), param_spec(b3r),
        ],
        out_specs=pl.BlockSpec((tb, out_dim), lambda i: (i, 0)),
        compiler_params=pltpu.CompilerParams(
            dimension_semantics=("parallel",),
            vmem_limit_bytes=32 * 1024 * 1024),
    )(x, w1c, b1r, w2c, b2r, w3c, b3r)


def potential_ref(x, params):
    """Pure-JAX reference of the PyTorch forward (unfolded params, f32)."""
    w1, b1, g1, be1, w2, b2, g2, be2, w3, b3 = params

    def layernorm(h, g, be):
        mu = jnp.mean(h, axis=-1, keepdims=True)
        var = jnp.mean(jnp.square(h - mu), axis=-1, keepdims=True)
        return (h - mu) * lax.rsqrt(var + _LN_EPS) * g + be

    h = layernorm(jnp.tanh(x @ w1 + b1), g1, be1)
    h = layernorm(jnp.tanh(h @ w2 + b2), g2, be2)
    return h @ w3 + b3


if __name__ == "__main__":
    key = jax.random.PRNGKey(0)
    in_dim = 32      # hidden=32  -> fc1: 64->32, fc2: 32->16, fc3: 16->10
    batch = 8

    ks = jax.random.split(key, 9)
    x = jax.random.normal(ks[0], (batch, 2 * in_dim), dtype=jnp.float32)

    def init_linear(k, fan_in, fan_out):
        kw, kb = jax.random.split(k)
        lim = 1.0 / jnp.sqrt(jnp.float32(fan_in))
        w = jax.random.uniform(kw, (fan_in, fan_out), jnp.float32, -lim, lim)
        bb = jax.random.uniform(kb, (fan_out,), jnp.float32, -lim, lim)
        return w, bb

    w1, b1 = init_linear(ks[1], 2 * in_dim, in_dim)
    w2, b2 = init_linear(ks[2], in_dim, in_dim // 2)
    w3, b3 = init_linear(ks[3], in_dim // 2, 10)
    g1 = 1.0 + 0.1 * jax.random.normal(ks[4], (in_dim,), jnp.float32)
    be1 = 0.1 * jax.random.normal(ks[5], (in_dim,), jnp.float32)
    g2 = 1.0 + 0.1 * jax.random.normal(ks[6], (in_dim // 2,), jnp.float32)
    be2 = 0.1 * jax.random.normal(ks[7], (in_dim // 2,), jnp.float32)

    params = (w1, b1, g1, be1, w2, b2, g2, be2, w3, b3)
    ref = potential_ref(x, params)

    # 1) Exact-semantics path (f32 MXU operands) at tight tolerance.
    out_f32 = jax.block_until_ready(
        potential_forward(x, params, matmul_dtype=jnp.float32))
    assert out_f32.shape == (batch, 10)
    assert jnp.allclose(out_f32, ref, atol=1e-4, rtol=1e-4), (
        float(jnp.max(jnp.abs(out_f32 - ref))))

    # 2) Default fast path (bf16 MXU operands, f32 accumulation).
    out_bf = jax.block_until_ready(potential_forward(x, params))
    assert jnp.allclose(out_bf, ref, atol=5e-2, rtol=5e-2), (
        float(jnp.max(jnp.abs(out_bf - ref))))

    # 3) Ragged grid path: batch not a multiple of the row tile, no wrapper pad.
    x2 = jax.random.normal(ks[8], (200, 2 * in_dim), dtype=jnp.float32)
    out2 = jax.block_until_ready(
        potential_forward(x2, params, matmul_dtype=jnp.float32))
    ref2 = potential_ref(x2, params)
    assert out2.shape == (200, 10)
    assert jnp.allclose(out2, ref2, atol=1e-4, rtol=1e-4), (
        float(jnp.max(jnp.abs(out2 - ref2))))

    print("KERNEL_OK")
</pallas_src>

<mosaic_0001>
module attributes {stable_mosaic.version = 11 : i64} {
  func.func @_potential_kernel(%arg0: i32, %arg1: memref<8x64xf32, #tpu.memory_space<vmem>>, %arg2: memref<64x32xf32, #tpu.memory_space<vmem>>, %arg3: memref<1x32xf32, #tpu.memory_space<vmem>>, %arg4: memref<32x16xf32, #tpu.memory_space<vmem>>, %arg5: memref<1x16xf32, #tpu.memory_space<vmem>>, %arg6: memref<16x10xf32, #tpu.memory_space<vmem>>, %arg7: memref<1x10xf32, #tpu.memory_space<vmem>>, %arg8: memref<8x10xf32, #tpu.memory_space<vmem>>) attributes {dimension_semantics = [#tpu.dimension_semantics<parallel>], iteration_bounds = array<i64: 1>, scalar_prefetch = 0 : i64, scratch_operands = 0 : i64, tpu.core_type = #tpu.core_type<tc>, window_params = [{transform_indices = @transform_0, window_bounds = array<i64: 8, 64>}, {pipeline_mode = #tpu.pipeline_mode<synchronous>, transform_indices = @transform_1, window_bounds = array<i64: 64, 32>}, {pipeline_mode = #tpu.pipeline_mode<synchronous>, transform_indices = @transform_2, window_bounds = array<i64: 1, 32>}, {pipeline_mode = #tpu.pipeline_mode<synchronous>, transform_indices = @transform_3, window_bounds = array<i64: 32, 16>}, {pipeline_mode = #tpu.pipeline_mode<synchronous>, transform_indices = @transform_4, window_bounds = array<i64: 1, 16>}, {pipeline_mode = #tpu.pipeline_mode<synchronous>, transform_indices = @transform_5, window_bounds = array<i64: 16, 10>}, {pipeline_mode = #tpu.pipeline_mode<synchronous>, transform_indices = @transform_6, window_bounds = array<i64: 1, 10>}, {transform_indices = @transform_7, window_bounds = array<i64: 8, 10>}]} {
    %c0 = arith.constant 0 : index
    %c0_0 = arith.constant 0 : index
    %0 = vector.load %arg1[%c0, %c0_0] : memref<8x64xf32, #tpu.memory_space<vmem>>, vector<8x64xf32>
    %c0_1 = arith.constant 0 : index
    %c0_2 = arith.constant 0 : index
    %1 = vector.load %arg2[%c0_1, %c0_2] : memref<64x32xf32, #tpu.memory_space<vmem>>, vector<64x32xf32>
    %cst = arith.constant dense<0.000000e+00> : vector<8x32xf32>
    %2 = tpu.matmul %0, %1, %cst {dimension_numbers = #tpu.dot_dimension_numbers<[1], [0], [0], [1], [0, 0, 1, 1], [], []>} : vector<8x64xf32>, vector<64x32xf32>, vector<8x32xf32> -> vector<8x32xf32>
    %c0_3 = arith.constant 0 : index
    %c0_4 = arith.constant 0 : index
    %3 = vector.load %arg3[%c0_3, %c0_4] : memref<1x32xf32, #tpu.memory_space<vmem>>, vector<1x32xf32>
    %4 = vector.broadcast %3 : vector<1x32xf32> to vector<8x32xf32>
    %5 = arith.addf %2, %4 : vector<8x32xf32>
    %6 = math.tanh %5 : vector<8x32xf32>
    %cst_5 = arith.constant dense<0.000000e+00> : vector<8xf32>
    %7 = vector.multi_reduction <add>, %6, %cst_5 [1] : vector<8x32xf32> to vector<8xf32>
    %8 = vector.shape_cast %7 : vector<8xf32> to vector<8x1xf32>
    %cst_6 = arith.constant 3.200000e+01 : f32
    %9 = vector.broadcast %cst_6 : f32 to vector<8x1xf32>
    %10 = arith.divf %8, %9 : vector<8x1xf32>
    %11 = vector.broadcast %10 : vector<8x1xf32> to vector<8x32xf32>
    %12 = arith.subf %6, %11 : vector<8x32xf32>
    %13 = arith.mulf %12, %12 : vector<8x32xf32>
    %cst_7 = arith.constant dense<0.000000e+00> : vector<8xf32>
    %14 = vector.multi_reduction <add>, %13, %cst_7 [1] : vector<8x32xf32> to vector<8xf32>
    %15 = vector.shape_cast %14 : vector<8xf32> to vector<8x1xf32>
    %cst_8 = arith.constant 3.200000e+01 : f32
    %16 = vector.broadcast %cst_8 : f32 to vector<8x1xf32>
    %17 = arith.divf %15, %16 : vector<8x1xf32>
    %18 = vector.broadcast %10 : vector<8x1xf32> to vector<8x32xf32>
    %19 = arith.subf %6, %18 : vector<8x32xf32>
    %cst_9 = arith.constant 9.99999974E-6 : f32
    %20 = vector.broadcast %cst_9 : f32 to vector<8x1xf32>
    %21 = arith.addf %17, %20 : vector<8x1xf32>
    %22 = math.rsqrt %21 : vector<8x1xf32>
    %23 = vector.broadcast %22 : vector<8x1xf32> to vector<8x32xf32>
    %24 = arith.mulf %19, %23 : vector<8x32xf32>
    %c0_10 = arith.constant 0 : index
    %c0_11 = arith.constant 0 : index
    %25 = vector.load %arg4[%c0_10, %c0_11] : memref<32x16xf32, #tpu.memory_space<vmem>>, vector<32x16xf32>
    %cst_12 = arith.constant dense<0.000000e+00> : vector<8x16xf32>
    %26 = tpu.matmul %24, %25, %cst_12 {dimension_numbers = #tpu.dot_dimension_numbers<[1], [0], [0], [1], [0, 0, 1, 1], [], []>} : vector<8x32xf32>, vector<32x16xf32>, vector<8x16xf32> -> vector<8x16xf32>
    %c0_13 = arith.constant 0 : index
    %c0_14 = arith.constant 0 : index
    %27 = vector.load %arg5[%c0_13, %c0_14] : memref<1x16xf32, #tpu.memory_space<vmem>>, vector<1x16xf32>
    %28 = vector.broadcast %27 : vector<1x16xf32> to vector<8x16xf32>
    %29 = arith.addf %26, %28 : vector<8x16xf32>
    %30 = math.tanh %29 : vector<8x16xf32>
    %cst_15 = arith.constant dense<0.000000e+00> : vector<8xf32>
    %31 = vector.multi_reduction <add>, %30, %cst_15 [1] : vector<8x16xf32> to vector<8xf32>
    %32 = vector.shape_cast %31 : vector<8xf32> to vector<8x1xf32>
    %cst_16 = arith.constant 1.600000e+01 : f32
    %33 = vector.broadcast %cst_16 : f32 to vector<8x1xf32>
    %34 = arith.divf %32, %33 : vector<8x1xf32>
    %35 = vector.broadcast %34 : vector<8x1xf32> to vector<8x16xf32>
    %36 = arith.subf %30, %35 : vector<8x16xf32>
    %37 = arith.mulf %36, %36 : vector<8x16xf32>
    %cst_17 = arith.constant dense<0.000000e+00> : vector<8xf32>
    %38 = vector.multi_reduction <add>, %37, %cst_17 [1] : vector<8x16xf32> to vector<8xf32>
    %39 = vector.shape_cast %38 : vector<8xf32> to vector<8x1xf32>
    %cst_18 = arith.constant 1.600000e+01 : f32
    %40 = vector.broadcast %cst_18 : f32 to vector<8x1xf32>
    %41 = arith.divf %39, %40 : vector<8x1xf32>
    %42 = vector.broadcast %34 : vector<8x1xf32> to vector<8x16xf32>
    %43 = arith.subf %30, %42 : vector<8x16xf32>
    %cst_19 = arith.constant 9.99999974E-6 : f32
    %44 = vector.broadcast %cst_19 : f32 to vector<8x1xf32>
    %45 = arith.addf %41, %44 : vector<8x1xf32>
    %46 = math.rsqrt %45 : vector<8x1xf32>
    %47 = vector.broadcast %46 : vector<8x1xf32> to vector<8x16xf32>
    %48 = arith.mulf %43, %47 : vector<8x16xf32>
    %c0_20 = arith.constant 0 : index
    %c0_21 = arith.constant 0 : index
    %49 = vector.load %arg6[%c0_20, %c0_21] : memref<16x10xf32, #tpu.memory_space<vmem>>, vector<16x10xf32>
    %cst_22 = arith.constant dense<0.000000e+00> : vector<8x10xf32>
    %50 = tpu.matmul %48, %49, %cst_22 {dimension_numbers = #tpu.dot_dimension_numbers<[1], [0], [0], [1], [0, 0, 1, 1], [], []>} : vector<8x16xf32>, vector<16x10xf32>, vector<8x10xf32> -> vector<8x10xf32>
    %c0_23 = arith.constant 0 : index
    %c0_24 = arith.constant 0 : index
    %51 = vector.load %arg7[%c0_23, %c0_24] : memref<1x10xf32, #tpu.memory_space<vmem>>, vector<1x10xf32>
    %52 = vector.broadcast %51 : vector<1x10xf32> to vector<8x10xf32>
    %53 = arith.addf %50, %52 : vector<8x10xf32>
    %c0_25 = arith.constant 0 : index
    %c0_26 = arith.constant 0 : index
    %54 = vector.load %arg8[%c0_25, %c0_26] : memref<8x10xf32, #tpu.memory_space<vmem>>, vector<8x10xf32>
    tpu.vector_store %arg8[%c0_25, %c0_26], %53 {strides = array<i32>} : memref<8x10xf32, #tpu.memory_space<vmem>>, vector<8x10xf32>,
    return
  }
  func.func @transform_0(%arg0: i32) -> (i32, i32) {
    %c0_i32 = arith.constant 0 : i32
    %c0_i32_0 = arith.constant 0 : i32
    return %arg0, %c0_i32 : i32, i32
  }
  func.func @transform_1(%arg0: i32) -> (i32, i32) {
    %c0_i32 = arith.constant 0 : i32
    %c0_i32_0 = arith.constant 0 : i32
    %c0_i32_1 = arith.constant 0 : i32
    return %c0_i32, %c0_i32_0 : i32, i32
  }
  func.func @transform_2(%arg0: i32) -> (i32, i32) {
    %c0_i32 = arith.constant 0 : i32
    %c0_i32_0 = arith.constant 0 : i32
    %c0_i32_1 = arith.constant 0 : i32
    return %c0_i32, %c0_i32_0 : i32, i32
  }
  func.func @transform_3(%arg0: i32) -> (i32, i32) {
    %c0_i32 = arith.constant 0 : i32
    %c0_i32_0 = arith.constant 0 : i32
    %c0_i32_1 = arith.constant 0 : i32
    return %c0_i32, %c0_i32_0 : i32, i32
  }
  func.func @transform_4(%arg0: i32) -> (i32, i32) {
    %c0_i32 = arith.constant 0 : i32
    %c0_i32_0 = arith.constant 0 : i32
    %c0_i32_1 = arith.constant 0 : i32
    return %c0_i32, %c0_i32_0 : i32, i32
  }
  func.func @transform_5(%arg0: i32) -> (i32, i32) {
    %c0_i32 = arith.constant 0 : i32
    %c0_i32_0 = arith.constant 0 : i32
    %c0_i32_1 = arith.constant 0 : i32
    return %c0_i32, %c0_i32_0 : i32, i32
  }
  func.func @transform_6(%arg0: i32) -> (i32, i32) {
    %c0_i32 = arith.constant 0 : i32
    %c0_i32_0 = arith.constant 0 : i32
    %c0_i32_1 = arith.constant 0 : i32
    return %c0_i32, %c0_i32_0 : i32, i32
  }
  func.func @transform_7(%arg0: i32) -> (i32, i32) {
    %c0_i32 = arith.constant 0 : i32
    %c0_i32_0 = arith.constant 0 : i32
    return %arg0, %c0_i32 : i32, i32
  }
}

</mosaic_0001>

<llo_original>
// kernel: tpu_custom_call.1
$region0: #{tpu_custom_call.1}
  #allocation0 [shape = 'u32[]', space=smem, size = 0x4, offset = 0x4, fixed_abs, tag = 'smem constant byte address 0x4 - core index']
  #allocation1 [shape = 'u32[144,128]{1,0:T(1,128)}', space=vmem, size = 0x12000, scoped, tag = 'internal scratch']
  %s0 = inlined_call_operand.vmem [shape: f32[8,64], index: 0, kind: input, shape index: {}]
  %s1 = inlined_call_operand.vmem [shape: f32[64,32], index: 1, kind: input, shape index: {}]
  %s2 = inlined_call_operand.vmem [shape: f32[1,32], index: 2, kind: input, shape index: {}]
  %s3 = inlined_call_operand.vmem [shape: f32[32,16], index: 3, kind: input, shape index: {}]
  %s4 = inlined_call_operand.vmem [shape: f32[1,16], index: 4, kind: input, shape index: {}]
  %s5 = inlined_call_operand.vmem [shape: f32[16,10], index: 5, kind: input, shape index: {}]
  %s6 = inlined_call_operand.vmem [shape: f32[1,10], index: 6, kind: input, shape index: {}]
  %s7 = inlined_call_operand.hbm [shape: f32[8,10], index: 7, kind: output, shape index: {}]
  %s8 = sld [smem:[#allocation0]]
  $region38: #{tpu_custom_call.1} parent=0
    _
  %s10 = ssub.s32 1, %s8
  %s11 = scalar_select 0, %s10, %s8
  $region1: #{tpu_custom_call.1} parent=0
    #allocation2 [shape = 'u8[4096]{0}', space=vmem, size = 0x1000, scoped, tag = 'output window, operand 0, single buffered']
    #allocation3 [shape = 's32[1]{0}', space=sflag, size = 0x4, scoped, tag = 'scoped memory for tpu_custom_call.1']
    %12 = vsyncpa [#allocation3], 0
    // Predicated region
    $region2: #{tpu_custom_call.1} parent=1 // pred_check
      _
    $region3: #{tpu_custom_call.1} parent=1 // pred_check_branch
      %14 = sbr.rel (0) target = $region5
    $region4: #{tpu_custom_call.1} parent=1 // pred_region
      _
    $region5: #{tpu_custom_call.1} parent=1 // pred_fallthru
      _
    // Predicated region
    $region6: #{tpu_custom_call.1} parent=1 // pred_check
      _
    $region7: #{tpu_custom_call.1} parent=1 // pred_check_branch
      %16 = sbr.rel (0) target = $region9
    $region8: #{tpu_custom_call.1} parent=1 // pred_region
      _
    $region9: #{tpu_custom_call.1} parent=1 // pred_fallthru
      _
    // Predicated region
    $region10: #{tpu_custom_call.1} parent=1 // pred_check
      _
    $region11: #{tpu_custom_call.1} parent=1 // pred_check_branch
      %18 = sbr.rel (0) target = $region13
    $region12: #{tpu_custom_call.1} parent=1 // pred_region
      _
    $region13: #{tpu_custom_call.1} parent=1 // pred_fallthru
      _
    // Predicated region
    $region14: #{tpu_custom_call.1} parent=1 // pred_check
      _
    $region15: #{tpu_custom_call.1} parent=1 // pred_check_branch
      %20 = sbr.rel (0) target = $region17
    $region16: #{tpu_custom_call.1} parent=1 // pred_region
      _
    $region17: #{tpu_custom_call.1} parent=1 // pred_fallthru
      _
    // Predicated region
    $region18: #{tpu_custom_call.1} parent=1 // pred_check
      _
    $region19: #{tpu_custom_call.1} parent=1 // pred_check_branch
      %22 = sbr.rel (0) target = $region21
    $region20: #{tpu_custom_call.1} parent=1 // pred_region
      _
    $region21: #{tpu_custom_call.1} parent=1 // pred_fallthru
      _
    // Predicated region
    $region22: #{tpu_custom_call.1} parent=1 // pred_check
      _
    $region23: #{tpu_custom_call.1} parent=1 // pred_check_branch
      %24 = sbr.rel (0) target = $region25
    $region24: #{tpu_custom_call.1} parent=1 // pred_region
      _
    $region25: #{tpu_custom_call.1} parent=1 // pred_fallthru
      _
    // Predicated region
    $region26: #{tpu_custom_call.1} parent=1 // pred_check
      _
    $region27: #{tpu_custom_call.1} parent=1 // pred_check_branch
      %26 = sbr.rel (0) target = $region29
    $region28: #{tpu_custom_call.1} parent=1 // pred_region
      _
    $region29: #{tpu_custom_call.1} parent=1 // pred_fallthru
      _
    %v27 = vld [vmem:[%s0] sm:$0xff]
    %v28 = vld [vmem:[%s1] sm:$0xff]
    %v29 = vld [vmem:[%s1 + $0x8] sm:$0xff]
    %v30 = vld [vmem:[%s1 + $0x10] sm:$0xff]
    %v31 = vld [vmem:[%s1 + $0x18] sm:$0xff]
    %v32 = vld [vmem:[%s1 + $0x20] sm:$0xff]
    %v33 = vld [vmem:[%s1 + $0x28] sm:$0xff]
    %v34 = vld [vmem:[%s1 + $0x30] sm:$0xff]
    %v35 = vld [vmem:[%s1 + $0x38] sm:$0xff]
    %v36 = vld [vmem:[%s2] sm:$0x1]
    %v38 = vlaneseq
    %v39 = vshrl.u32 %v38, 7
    %v40 = vsub.s32 0, %v39
    %v41 = vrot.slane %v36, %v40
    %vm43 = vcmask 523264
    %v45 = vsel %vm43, %v27, 0
    %47 = vmatprep.subr.mxu0 0.0
    %48 = vmatpush1.msra.mxu0 %v28
    %49 = vmatprep.subr.mxu0 0.0
    %50 = vmatpush1.msra.mxu0 %v29
    %51 = vmatprep.subr.mxu0 0.0
    %52 = vmatpush1.msra.mxu0 %v30
    %53 = vmatprep.subr.mxu0 0.0
    %54 = vmatpush1.msra.mxu0 %v31
    %55 = vmatprep.subr.mxu0 0.0
    %56 = vmatpush1.msra.mxu0 %v32
    %57 = vmatprep.subr.mxu0 0.0
    %58 = vmatpush1.msra.mxu0 %v33
    %59 = vmatprep.subr.mxu0 0.0
    %60 = vmatpush1.msra.mxu0 %v34
    %61 = vmatprep.subr.mxu0 0.0
    %62 = vmatpush1.msra.mxu0 %v35
    %63 = vmatprep.subr.mxu0 0.0
    %64 = vmatpush1.msra.mxu0 0.0
    %65 = vmatprep.subr.mxu0 0.0
    %66 = vmatpush1.msra.mxu0 0.0
    %67 = vmatprep.subr.mxu0 0.0
    %68 = vmatpush1.msra.mxu0 0.0
    %69 = vmatprep.subr.mxu0 0.0
    %70 = vmatpush1.msra.mxu0 0.0
    %71 = vmatprep.subr.mxu0 0.0
    %72 = vmatpush1.msra.mxu0 0.0
    %73 = vmatprep.subr.mxu0 0.0
    %74 = vmatpush1.msra.mxu0 0.0
    %75 = vmatprep.subr.mxu0 0.0
    %76 = vmatpush1.msra.mxu0 0.0
    %77 = vmatprep.subr.mxu0 0.0
    %78 = vmatpush1.msra.mxu0 0.0
    %79 = vmatprep.subr.mxu0 0.0
    %80 = vmatpush1.msra.mxu0 0.0
    %81 = vmatprep.subr.mxu0 0.0
    %82 = vmatpush1.msra.mxu0 0.0
    %83 = vmatprep.subr.mxu0 0.0
    %84 = vmatpush1.msra.mxu0 0.0
    %85 = vmatprep.subr.mxu0 0.0
    %86 = vmatpush1.msra.mxu0 0.0
    %87 = vmatprep.subr.mxu0 0.0
    %88 = vmatpush1.msra.mxu0 0.0
    %89 = vmatprep.subr.mxu0 0.0
    %90 = vmatpush1.msra.mxu0 0.0
    %91 = vmatprep.subr.mxu0 0.0
    %92 = vmatpush1.msra.mxu0 0.0
    %93 = vmatprep.subr.mxu0 0.0
    %94 = vmatpush1.msra.mxu0 0.0
    %95 = vmatprep.subr.mxu0 0.0
    %96 = vmatpush1.msra.mxu0 0.0
    %97 = vmatprep.subr.mxu0 0.0
    %98 = vmatpush1.msra.mxu0 0.0
    %99 = vmatprep.subr.mxu0 0.0
    %100 = vmatpush1.msra.mxu0 0.0
    %101 = vmatprep.subr.mxu0 0.0
    %102 = vmatpush1.msra.mxu0 0.0
    %103 = vmatprep.subr.mxu0 0.0
    %104 = vmatpush1.msra.mxu0 0.0
    %105 = vmatprep.subr.mxu0 0.0
    %106 = vmatpush1.msra.mxu0 0.0
    %107 = vmatprep.subr.mxu0 0.0
    %108 = vmatpush1.msra.mxu0 0.0
    %109 = vmatprep.subr.mxu0 0.0
    %110 = vmatpush1.msra.mxu0 0.0
    %111 = vmatprep.mubr.f32.mxu0 0.0
    %112 = vmatmul.mubr.f32.gmra.mrb[0].mxu0 %v45
    %v113 = vpop.f32.mrb[0].mxu0
    %v114 = vadd.f32 %v41, %v113
    %v115 = vpop.f32.mrb[0].mxu0
    %116 = vdwg.mxu0
    %v117 = vtanh.pop %v114
    %vm118 = vcmask 261120
    %v119 = vsel %vm118, %v117, 0.0
    %120 = vadd.xlane.f32.xlu0 %v119
    %v121 = vpop.xlane.xlu0 %120
    %v122 = vrcp.pop 32.0
    %v123 = vmul.f32 %v121, %v122
    %v124 = vsub.f32 %v117, %v123
    %v125 = vmul.f32 %v124, %v124
    %v126 = vsel %vm118, %v125, 0.0
    %127 = vadd.xlane.f32.xlu0 %v126
    %v128 = vpop.xlane.xlu0 %127
    %v129 = vmul.f32 %v128, %v122
    %v130 = vadd.f32 %v129, 1e-05
    %v131 = vrsqrt.pop %v130
    %v132 = vmul.f32 %v124, %v131
    %v133 = vld [vmem:[%s3] sm:$0xff]
    %v134 = vld [vmem:[%s3 + $0x8] sm:$0xff]
    %v135 = vld [vmem:[%s3 + $0x10] sm:$0xff]
    %v136 = vld [vmem:[%s3 + $0x18] sm:$0xff]
    %v137 = vld [vmem:[%s4] sm:$0x1]
    %v139 = vlaneseq
    %v140 = vshrl.u32 %v139, 7
    %v141 = vsub.s32 0, %v140
    %v142 = vrot.slane %v137, %v141
    %v145 = vsel %vm118, %v132, 0
    %147 = vmatprep.subr.mxu0 0.0
    %148 = vmatpush1.msra.mxu0 %v133
    %149 = vmatprep.subr.mxu0 0.0
    %150 = vmatpush1.msra.mxu0 %v134
    %151 = vmatprep.subr.mxu0 0.0
    %152 = vmatpush1.msra.mxu0 %v135
    %153 = vmatprep.subr.mxu0 0.0
    %154 = vmatpush1.msra.mxu0 %v136
    %155 = vmatprep.subr.mxu0 0.0
    %156 = vmatpush1.msra.mxu0 0.0
    %157 = vmatprep.subr.mxu0 0.0
    %158 = vmatpush1.msra.mxu0 0.0
    %159 = vmatprep.subr.mxu0 0.0
    %160 = vmatpush1.msra.mxu0 0.0
    %161 = vmatprep.subr.mxu0 0.0
    %162 = vmatpush1.msra.mxu0 0.0
    %163 = vmatprep.subr.mxu0 0.0
    %164 = vmatpush1.msra.mxu0 0.0
    %165 = vmatprep.subr.mxu0 0.0
    %166 = vmatpush1.msra.mxu0 0.0
    %167 = vmatprep.subr.mxu0 0.0
    %168 = vmatpush1.msra.mxu0 0.0
    %169 = vmatprep.subr.mxu0 0.0
    %170 = vmatpush1.msra.mxu0 0.0
    %171 = vmatprep.subr.mxu0 0.0
    %172 = vmatpush1.msra.mxu0 0.0
    %173 = vmatprep.subr.mxu0 0.0
    %174 = vmatpush1.msra.mxu0 0.0
    %175 = vmatprep.subr.mxu0 0.0
    %176 = vmatpush1.msra.mxu0 0.0
    %177 = vmatprep.subr.mxu0 0.0
    %178 = vmatpush1.msra.mxu0 0.0
    %179 = vmatprep.subr.mxu0 0.0
    %180 = vmatpush1.msra.mxu0 0.0
    %181 = vmatprep.subr.mxu0 0.0
    %182 = vmatpush1.msra.mxu0 0.0
    %183 = vmatprep.subr.mxu0 0.0
    %184 = vmatpush1.msra.mxu0 0.0
    %185 = vmatprep.subr.mxu0 0.0
    %186 = vmatpush1.msra.mxu0 0.0
    %187 = vmatprep.subr.mxu0 0.0
    %188 = vmatpush1.msra.mxu0 0.0
    %189 = vmatprep.subr.mxu0 0.0
    %190 = vmatpush1.msra.mxu0 0.0
    %191 = vmatprep.subr.mxu0 0.0
    %192 = vmatpush1.msra.mxu0 0.0
    %193 = vmatprep.subr.mxu0 0.0
    %194 = vmatpush1.msra.mxu0 0.0
    %195 = vmatprep.subr.mxu0 0.0
    %196 = vmatpush1.msra.mxu0 0.0
    %197 = vmatprep.subr.mxu0 0.0
    %198 = vmatpush1.msra.mxu0 0.0
    %199 = vmatprep.subr.mxu0 0.0
    %200 = vmatpush1.msra.mxu0 0.0
    %201 = vmatprep.subr.mxu0 0.0
    %202 = vmatpush1.msra.mxu0 0.0
    %203 = vmatprep.subr.mxu0 0.0
    %204 = vmatpush1.msra.mxu0 0.0
    %205 = vmatprep.subr.mxu0 0.0
    %206 = vmatpush1.msra.mxu0 0.0
    %207 = vmatprep.subr.mxu0 0.0
    %208 = vmatpush1.msra.mxu0 0.0
    %209 = vmatprep.subr.mxu0 0.0
    %210 = vmatpush1.msra.mxu0 0.0
    %211 = vmatprep.mubr.f32.mxu0 0.0
    %212 = vmatmul.mubr.f32.gmra.mrb[0].mxu0 %v145
    %v213 = vpop.f32.mrb[0].mxu0
    %v214 = vadd.f32 %v142, %v213
    %v215 = vpop.f32.mrb[0].mxu0
    %216 = vdwg.mxu0
    %v217 = vtanh.pop %v214
    %vm218 = vcmask 130048
    %v219 = vsel %vm218, %v217, 0.0
    %220 = vadd.xlane.f32.xlu0 %v219
    %v221 = vpop.xlane.xlu0 %220
    %v222 = vrcp.pop 16.0
    %v223 = vmul.f32 %v221, %v222
    %v224 = vsub.f32 %v217, %v223
    %v225 = vmul.f32 %v224, %v224
    %v226 = vsel %vm218, %v225, 0.0
    %227 = vadd.xlane.f32.xlu0 %v226
    %v228 = vpop.xlane.xlu0 %227
    %v229 = vmul.f32 %v228, %v222
    %v230 = vadd.f32 %v229, 1e-05
    %v231 = vrsqrt.pop %v230
    %v232 = vmul.f32 %v224, %v231
    %v233 = vld [vmem:[%s5] sm:$0xff]
    %v234 = vld [vmem:[%s5 + $0x8] sm:$0xff]
    %v235 = vld [vmem:[%s6] sm:$0x1]
    %v237 = vlaneseq
    %v238 = vshrl.u32 %v237, 7
    %v239 = vsub.s32 0, %v238
    %v240 = vrot.slane %v235, %v239
    %v243 = vsel %vm218, %v232, 0
    %245 = vmatprep.subr.mxu0 0.0
    %246 = vmatpush1.msra.mxu0 %v233
    %247 = vmatprep.subr.mxu0 0.0
    %248 = vmatpush1.msra.mxu0 %v234
    %249 = vmatprep.subr.mxu0 0.0
    %250 = vmatpush1.msra.mxu0 0.0
    %251 = vmatprep.subr.mxu0 0.0
    %252 = vmatpush1.msra.mxu0 0.0
    %253 = vmatprep.subr.mxu0 0.0
    %254 = vmatpush1.msra.mxu0 0.0
    %255 = vmatprep.subr.mxu0 0.0
    %256 = vmatpush1.msra.mxu0 0.0
    %257 = vmatprep.subr.mxu0 0.0
    %258 = vmatpush1.msra.mxu0 0.0
    %259 = vmatprep.subr.mxu0 0.0
    %260 = vmatpush1.msra.mxu0 0.0
    %261 = vmatprep.subr.mxu0 0.0
    %262 = vmatpush1.msra.mxu0 0.0
    %263 = vmatprep.subr.mxu0 0.0
    %264 = vmatpush1.msra.mxu0 0.0
    %265 = vmatprep.subr.mxu0 0.0
    %266 = vmatpush1.msra.mxu0 0.0
    %267 = vmatprep.subr.mxu0 0.0
    %268 = vmatpush1.msra.mxu0 0.0
    %269 = vmatprep.subr.mxu0 0.0
    %270 = vmatpush1.msra.mxu0 0.0
    %271 = vmatprep.subr.mxu0 0.0
    %272 = vmatpush1.msra.mxu0 0.0
    %273 = vmatprep.subr.mxu0 0.0
    %274 = vmatpush1.msra.mxu0 0.0
    %275 = vmatprep.subr.mxu0 0.0
    %276 = vmatpush1.msra.mxu0 0.0
    %277 = vmatprep.subr.mxu0 0.0
    %278 = vmatpush1.msra.mxu0 0.0
    %279 = vmatprep.subr.mxu0 0.0
    %280 = vmatpush1.msra.mxu0 0.0
    %281 = vmatprep.subr.mxu0 0.0
    %282 = vmatpush1.msra.mxu0 0.0
    %283 = vmatprep.subr.mxu0 0.0
    %284 = vmatpush1.msra.mxu0 0.0
    %285 = vmatprep.subr.mxu0 0.0
    %286 = vmatpush1.msra.mxu0 0.0
    %287 = vmatprep.subr.mxu0 0.0
    %288 = vmatpush1.msra.mxu0 0.0
    %289 = vmatprep.subr.mxu0 0.0
    %290 = vmatpush1.msra.mxu0 0.0
    %291 = vmatprep.subr.mxu0 0.0
    %292 = vmatpush1.msra.mxu0 0.0
    %293 = vmatprep.subr.mxu0 0.0
    %294 = vmatpush1.msra.mxu0 0.0
    %295 = vmatprep.subr.mxu0 0.0
    %296 = vmatpush1.msra.mxu0 0.0
    %297 = vmatprep.subr.mxu0 0.0
    %298 = vmatpush1.msra.mxu0 0.0
    %299 = vmatprep.subr.mxu0 0.0
    %300 = vmatpush1.msra.mxu0 0.0
    %301 = vmatprep.subr.mxu0 0.0
    %302 = vmatpush1.msra.mxu0 0.0
    %303 = vmatprep.subr.mxu0 0.0
    %304 = vmatpush1.msra.mxu0 0.0
    %305 = vmatprep.subr.mxu0 0.0
    %306 = vmatpush1.msra.mxu0 0.0
    %307 = vmatprep.subr.mxu0 0.0
    %308 = vmatpush1.msra.mxu0 0.0
    %309 = vmatprep.mubr.f32.mxu0 0.0
    %310 = vmatmul.mubr.f32.gmra.mrb[0].mxu0 %v243
    %v311 = vpop.f32.mrb[0].mxu0
    %v312 = vadd.f32 %v240, %v311
    %v313 = vpop.f32.mrb[0].mxu0
    %314 = vdwg.mxu0
    %vm315 = vcmask 80896
    %316 = vst.msk [vmem:[#allocation2] sm:$0xff] %vm315, %v312
    // Predicated region
    $region30: #{tpu_custom_call.1} parent=1 // pred_check
      _
    $region31: #{tpu_custom_call.1} parent=1 // pred_check_branch
      %318 = sbr.rel (0) target = $region33
    $region32: #{tpu_custom_call.1} parent=1 // pred_region
      %s320 = ssub.s32 128, 128
      %321 = vsyncadd [#allocation3], %s320
      %s323 = sshll.u32 [#allocation2], 4
      %s324 = int_to_ptr.vmem [resolvable:$true] %s323
      %326 = dma.vmem_to_hbm [thread:$0]  %s324, 128, %s7, [#allocation3]
    $region33: #{tpu_custom_call.1} parent=1 // pred_fallthru
      _
    // Predicated region
    $region34: #{tpu_custom_call.1} parent=1 // pred_check
      _
    $region35: #{tpu_custom_call.1} parent=1 // pred_check_branch
      %328 = sbr.rel (0) target = $region37
    $region36: #{tpu_custom_call.1} parent=1 // pred_region
      %329 = dma.done [#allocation3], 128
    $region37: #{tpu_custom_call.1} parent=1 // pred_fallthru
      _
    %330 = vsyncpa [#allocation3], 1

</llo_original>
